<compile_context>
chip_gen: v7x
topology: tpu7x:2x2x1
jax: 0.10.0
libtpu: 0.0.40
codegen_flags: <defaults>
</compile_context>

<pallas_src>
import functools

import jax
import jax.numpy as jnp
from jax.experimental import pallas as pl
from jax.experimental.pallas import tpu as pltpu

EPS = 1e-5


# --------------------------------------------------------------------------- kernels
def _fused_kernel(x_ref, w_ref, p_ref, o_ref, *, n_total):
    """Single-pass path (x fully resident): matmul -> batch stats -> affine + ReLU."""
    xb = x_ref[...].astype(jnp.bfloat16)            # in-kernel cast; x stays f32 in HBM
    wb = w_ref[...].astype(jnp.bfloat16)            # W tile in PyTorch (out, in) layout
    # y[n, f] = sum_k x[n, k] * W[f, k]  — MXU, f32 accumulation.
    o_ref[...] = jax.lax.dot_general(
        xb, wb, dimension_numbers=(((1,), (1,)), ((), ())),
        preferred_element_type=jnp.float32)
    y = o_ref[...]                                  # reuse o_ref as the y buffer

    inv_n = 1.0 / n_total
    mean = jnp.sum(y, axis=0, keepdims=True) * inv_n
    centered = y - mean
    var = jnp.sum(centered * centered, axis=0, keepdims=True) * inv_n   # two-pass variance

    gamma = p_ref[0:1, :]
    beta = p_ref[1:2, :]
    scale = gamma * jax.lax.rsqrt(var + EPS)        # EUP rsqrt
    shift = beta - mean * scale
    o_ref[...] = jnp.maximum(y * scale + shift, 0.0)


def _stats_stream_kernel(x_ref, w_ref, p_ref, y_ref, ss_ref, sum_ref, sq_ref, *,
                         n_total, n_tile, mask_tail):
    """Streaming phase A: per-N-tile matmul, stream raw y, accumulate per-feature stats."""
    i = pl.program_id(1)                            # N-tile index ("arbitrary" axis)

    @pl.when(i == 0)
    def _():
        sum_ref[...] = jnp.zeros_like(sum_ref)
        sq_ref[...] = jnp.zeros_like(sq_ref)

    xb = x_ref[...].astype(jnp.bfloat16)
    wb = w_ref[...].astype(jnp.bfloat16)
    y = jax.lax.dot_general(
        xb, wb, dimension_numbers=(((1,), (1,)), ((), ())),
        preferred_element_type=jnp.float32)         # (n_tile, tn)
    y_ref[...] = y                                  # raw y streamed to HBM

    if mask_tail:                                   # static: last N tile is partial
        rows = i * n_tile + jax.lax.broadcasted_iota(jnp.int32, y.shape, 0)
        y = jnp.where(rows < n_total, y, 0.0)
    sum_ref[...] += jnp.sum(y, axis=0, keepdims=True)
    sq_ref[...] += jnp.sum(y * y, axis=0, keepdims=True)

    @pl.when(i == pl.num_programs(1) - 1)
    def _():
        inv_n = 1.0 / n_total
        mean = sum_ref[...] * inv_n
        var = jnp.maximum(sq_ref[...] * inv_n - mean * mean, 0.0)
        gamma = p_ref[0:1, :]
        beta = p_ref[1:2, :]
        scale = gamma * jax.lax.rsqrt(var + EPS)
        ss_ref[0:1, :] = scale
        ss_ref[1:2, :] = beta - mean * scale


def _finalize_kernel(y_ref, ss_ref, o_ref):
    """Streaming phase B: out = max(y * scale + shift, 0) (in place via aliasing)."""
    o_ref[...] = jnp.maximum(y_ref[...] * ss_ref[0:1, :] + ss_ref[1:2, :], 0.0)


# --------------------------------------------------------------------------- wrapper
def _vmem_capacity_bytes():
    try:
        return int(pltpu.get_tpu_info().vmem_capacity_bytes)
    except Exception:
        return 64 << 20          # conservative fallback: v7x per-TensorCore VMEM


def _call_fused(x, w, params, n, in_ch, out_p, tn, vmem_cap):
    need = (n * in_ch * 4              # resident f32 x (constant index_map -> single buffer)
            + 2 * tn * in_ch * 4       # double-buffered W tile
            + 2 * 2 * tn * 4           # double-buffered gamma/beta tile
            + 2 * n * tn * 4           # double-buffered output tile
            + 2 * n * tn * 4)          # in-kernel f32 working set (centered y, etc.)
    vmem_limit = int(min(max(2 * need, 16 << 20), int(0.85 * vmem_cap)))
    cost = pl.CostEstimate(
        flops=2 * n * in_ch * out_p + 8 * n * out_p,
        transcendentals=out_p,
        bytes_accessed=x.size * 4 + w.size * 4 + params.size * 4 + n * out_p * 4)
    return pl.pallas_call(
        functools.partial(_fused_kernel, n_total=n),
        out_shape=jax.ShapeDtypeStruct((n, out_p), jnp.float32),
        grid=(out_p // tn,),
        in_specs=[
            pl.BlockSpec((n, in_ch), lambda j: (0, 0)),    # full x (batch stats span all N)
            pl.BlockSpec((tn, in_ch), lambda j: (j, 0)),   # W row tile (PyTorch layout)
            pl.BlockSpec((2, tn), lambda j: (0, j)),       # [gamma; beta] tile
        ],
        out_specs=pl.BlockSpec((n, tn), lambda j: (0, j)),
        compiler_params=pltpu.CompilerParams(
            dimension_semantics=("parallel",),
            vmem_limit_bytes=vmem_limit),
        cost_estimate=cost,
    )(x, w, params)


def _call_streaming(x, w, params, n, in_ch, out_p, tn_candidates, vmem_cap, budget,
                    n_tile):
    if n_tile is None:
        n_tile = min(512, ((n + 7) // 8) * 8)      # cover small batches in one exact tile
    n_tile = max(8, ((n_tile + 7) // 8) * 8)

    def stream_bytes(t_n, t):
        return (2 * t_n * in_ch * 4    # x tiles (double-buffered)
                + 2 * t * in_ch * 4    # W tiles
                + 2 * 2 * t * 4        # gamma/beta tiles
                + 2 * t_n * t * 4      # y output tiles
                + 2 * 2 * t * 4        # scale/shift output
                + 2 * 2 * t * 4        # sum / sumsq scratch
                + 2 * t_n * t * 4)     # in-kernel working set

    tn = tn_candidates[-1]
    for t in tn_candidates:
        if stream_bytes(n_tile, t) <= budget:
            tn = t
            break
    while stream_bytes(n_tile, tn) > budget and n_tile > 64:
        n_tile = max(64, ((n_tile // 2) + 7) // 8 * 8)

    n_tiles = int(pl.cdiv(n, n_tile))
    mask_tail = (n % n_tile) != 0
    need = stream_bytes(n_tile, tn)
    vmem_limit = int(min(max(2 * need, 16 << 20), int(0.85 * vmem_cap)))

    cost_a = pl.CostEstimate(
        flops=2 * n * in_ch * out_p + 4 * n * out_p,
        transcendentals=out_p,
        bytes_accessed=(out_p // tn) * x.size * 4 + w.size * 4 + n * out_p * 4)

    # Phase A: stream raw y while accumulating per-feature sum / sum-of-squares; the
    # fused (scale, shift) pair is emitted at the last batch tile of each feature tile.
    y_raw, ss = pl.pallas_call(
        functools.partial(_stats_stream_kernel, n_total=n, n_tile=n_tile,
                          mask_tail=mask_tail),
        out_shape=(jax.ShapeDtypeStruct((n, out_p), jnp.float32),
                   jax.ShapeDtypeStruct((2, out_p), jnp.float32)),
        grid=(out_p // tn, n_tiles),
        in_specs=[
            pl.BlockSpec((n_tile, in_ch), lambda j, i: (i, 0)),
            pl.BlockSpec((tn, in_ch), lambda j, i: (j, 0)),
            pl.BlockSpec((2, tn), lambda j, i: (0, j)),
        ],
        out_specs=(
            pl.BlockSpec((n_tile, tn), lambda j, i: (i, j)),
            pl.BlockSpec((2, tn), lambda j, i: (0, j)),
        ),
        scratch_shapes=[pltpu.VMEM((1, tn), jnp.float32),
                        pltpu.VMEM((1, tn), jnp.float32)],
        compiler_params=pltpu.CompilerParams(
            dimension_semantics=("parallel", "arbitrary"),
            vmem_limit_bytes=vmem_limit),
        cost_estimate=cost_a,
    )(x, w, params)

    # Phase B: elementwise affine + ReLU, done in place (y buffer donated to the output).
    cost_b = pl.CostEstimate(
        flops=2 * n * out_p, transcendentals=0,
        bytes_accessed=2 * n * out_p * 4 + ss.size * 4)
    return pl.pallas_call(
        _finalize_kernel,
        out_shape=jax.ShapeDtypeStruct((n, out_p), jnp.float32),
        grid=(n_tiles, out_p // tn),
        in_specs=[
            pl.BlockSpec((n_tile, tn), lambda i, j: (i, j)),
            pl.BlockSpec((2, tn), lambda i, j: (0, j)),
        ],
        out_specs=pl.BlockSpec((n_tile, tn), lambda i, j: (i, j)),
        input_output_aliases={0: 0},
        compiler_params=pltpu.CompilerParams(
            dimension_semantics=("parallel", "parallel"),
            vmem_limit_bytes=vmem_limit),
        cost_estimate=cost_b,
    )(y_raw, ss)


def linear_block_forward(x, weight, bias, gamma, beta, *,
                         force_streaming=False, n_tile=None):
    """linear_block forward: Linear(in,out) -> BatchNorm1d (training stats) -> ReLU.

    x: (N, in_ch) f32; weight: (out_ch, in_ch) PyTorch layout; bias/gamma/beta: (out_ch,).
    `bias` is accepted for API parity with nn.Linear but unused: training-mode BN
    subtracts the batch mean, which cancels the bias exactly (up to f32 rounding).
    """
    del bias

    x = jnp.asarray(x, jnp.float32)
    n, in_ch = x.shape
    out_ch = weight.shape[0]
    out_p = int(pl.cdiv(out_ch, 128)) * 128          # lane-dense padded feature count
    pad = out_p - out_ch

    # W stays in its native (out_ch, in_ch) layout; only zero-pad out_ch to a lane-dense
    # multiple of 128 when needed (pre-pad once outside the hot path in production).
    w = jnp.asarray(weight, jnp.float32)
    if pad:
        w = jnp.pad(w, ((0, pad), (0, 0)))
    params = jnp.stack([
        jnp.pad(jnp.asarray(gamma, jnp.float32), (0, pad)),
        jnp.pad(jnp.asarray(beta, jnp.float32), (0, pad)),
    ])                                               # (2, out_p); padded lanes -> output 0

    vmem_cap = _vmem_capacity_bytes()                # per-generation ceiling (v7x: 64 MiB)
    budget = int(0.70 * vmem_cap)

    # Largest feature tile (multiple of 128, dividing out_p) that fits the budget.
    tn_candidates = [t for t in (512, 256, 128) if t <= out_p and out_p % t == 0]

    def fused_bytes(t):
        return (n * in_ch * 4 + 2 * t * in_ch * 4 + 2 * 2 * t * 4
                + 2 * n * t * 4 + 2 * n * t * 4)

    tn_fused = None
    if not force_streaming:
        for t in tn_candidates:
            if fused_bytes(t) <= budget:
                tn_fused = t
                break

    if tn_fused is not None:
        out = _call_fused(x, w, params, n, in_ch, out_p, tn_fused, vmem_cap)
    else:
        out = _call_streaming(x, w, params, n, in_ch, out_p, tn_candidates,
                              vmem_cap, budget, n_tile)

    return out[:, :out_ch] if pad else out


# --------------------------------------------------------------------------- self-test
if __name__ == "__main__":
    key = jax.random.PRNGKey(0)
    k_x, k_w, k_b, k_x2 = jax.random.split(key, 4)

    def reference(x, weight, bias, gamma, beta):
        # Pure-JAX reference: same bf16-input / f32-accumulate matmul precision, WITH the
        # Linear bias, training-mode BN (biased variance) -> shows the bias cancels.
        y = jnp.dot(x.astype(jnp.bfloat16), weight.T.astype(jnp.bfloat16),
                    preferred_element_type=jnp.float32) + bias
        mean = jnp.mean(y, axis=0, keepdims=True)
        var = jnp.mean((y - mean) ** 2, axis=0, keepdims=True)
        return jnp.maximum((y - mean) / jnp.sqrt(var + EPS) * gamma + beta, 0.0)

    # ---- small case: fused single-pass path (x resident in VMEM) ----
    N, IN_CH, OUT_CH = 8, 32, 64
    x = jax.random.normal(k_x, (N, IN_CH), dtype=jnp.float32)
    bound = 1.0 / (IN_CH ** 0.5)
    weight = jax.random.uniform(k_w, (OUT_CH, IN_CH), minval=-bound, maxval=bound,
                                dtype=jnp.float32)
    bias = jax.random.uniform(k_b, (OUT_CH,), minval=-bound, maxval=bound,
                              dtype=jnp.float32)
    gamma = jnp.ones((OUT_CH,), jnp.float32)
    beta = jnp.zeros((OUT_CH,), jnp.float32)

    fused_fn = jax.jit(linear_block_forward)
    out = jax.block_until_ready(fused_fn(x, weight, bias, gamma, beta))
    assert out.shape == (N, OUT_CH)
    ref = reference(x, weight, bias, gamma, beta)
    err = float(jnp.max(jnp.abs(out - ref)))
    assert jnp.allclose(out, ref, atol=3e-3, rtol=3e-3), err

    # ---- larger case: N-tiled two-phase streaming path ----
    N2, IN2, OUT2 = 1024, 64, 64
    x2 = jax.random.normal(k_x2, (N2, IN2), dtype=jnp.float32)
    bound2 = 1.0 / (IN2 ** 0.5)
    w2 = jax.random.uniform(k_w, (OUT2, IN2), minval=-bound2, maxval=bound2,
                            dtype=jnp.float32)
    b2 = jax.random.uniform(k_b, (OUT2,), minval=-bound2, maxval=bound2,
                            dtype=jnp.float32)
    g2 = jnp.ones((OUT2,), jnp.float32)
    be2 = jnp.zeros((OUT2,), jnp.float32)

    stream_fn = jax.jit(functools.partial(linear_block_forward,
                                          force_streaming=True, n_tile=256))
    out2 = jax.block_until_ready(stream_fn(x2, w2, b2, g2, be2))
    assert out2.shape == (N2, OUT2)
    ref2 = reference(x2, w2, b2, g2, be2)
    err2 = float(jnp.max(jnp.abs(out2 - ref2)))
    assert jnp.allclose(out2, ref2, atol=3e-3, rtol=3e-3), err2

    print("KERNEL_OK")
</pallas_src>

<mosaic_0001>
module attributes {stable_mosaic.version = 11 : i64} {
  func.func @_fused_kernel(%arg0: i32, %arg1: memref<8x32xf32, #tpu.memory_space<vmem>>, %arg2: memref<128x32xf32, #tpu.memory_space<vmem>>, %arg3: memref<2x128xf32, #tpu.memory_space<vmem>>, %arg4: memref<8x128xf32, #tpu.memory_space<vmem>>) attributes {dimension_semantics = [#tpu.dimension_semantics<parallel>], iteration_bounds = array<i64: 1>, scalar_prefetch = 0 : i64, scratch_operands = 0 : i64, tpu.core_type = #tpu.core_type<tc>, window_params = [{pipeline_mode = #tpu.pipeline_mode<synchronous>, transform_indices = @transform_0, window_bounds = array<i64: 8, 32>}, {transform_indices = @transform_1, window_bounds = array<i64: 128, 32>}, {transform_indices = @transform_2, window_bounds = array<i64: 2, 128>}, {transform_indices = @transform_3, window_bounds = array<i64: 8, 128>}]} {
    %c0 = arith.constant 0 : index
    %c0_0 = arith.constant 0 : index
    %0 = vector.load %arg1[%c0, %c0_0] : memref<8x32xf32, #tpu.memory_space<vmem>>, vector<8x32xf32>
    %1 = arith.truncf %0 : vector<8x32xf32> to vector<8x32xbf16>
    %c0_1 = arith.constant 0 : index
    %c0_2 = arith.constant 0 : index
    %2 = vector.load %arg2[%c0_1, %c0_2] : memref<128x32xf32, #tpu.memory_space<vmem>>, vector<128x32xf32>
    %3 = arith.truncf %2 : vector<128x32xf32> to vector<128x32xbf16>
    %cst = arith.constant dense<0.000000e+00> : vector<8x128xf32>
    %4 = tpu.matmul %1, %3, %cst {dimension_numbers = #tpu.dot_dimension_numbers<[1], [1], [0], [0], [0, 0, 1, 0], [], []>} : vector<8x32xbf16>, vector<128x32xbf16>, vector<8x128xf32> -> vector<8x128xf32>
    %c0_3 = arith.constant 0 : index
    %c0_4 = arith.constant 0 : index
    %5 = vector.load %arg4[%c0_3, %c0_4] : memref<8x128xf32, #tpu.memory_space<vmem>>, vector<8x128xf32>
    tpu.vector_store %arg4[%c0_3, %c0_4], %4 {strides = array<i32>} : memref<8x128xf32, #tpu.memory_space<vmem>>, vector<8x128xf32>,
    %c0_5 = arith.constant 0 : index
    %c0_6 = arith.constant 0 : index
    %6 = vector.load %arg4[%c0_5, %c0_6] : memref<8x128xf32, #tpu.memory_space<vmem>>, vector<8x128xf32>
    %cst_7 = arith.constant dense<0.000000e+00> : vector<128xf32>
    %7 = vector.multi_reduction <add>, %6, %cst_7 [0] : vector<8x128xf32> to vector<128xf32>
    %8 = vector.shape_cast %7 : vector<128xf32> to vector<1x128xf32>
    %cst_8 = arith.constant 1.250000e-01 : f32
    %9 = vector.broadcast %cst_8 : f32 to vector<1x128xf32>
    %10 = arith.mulf %8, %9 : vector<1x128xf32>
    %11 = vector.broadcast %10 : vector<1x128xf32> to vector<8x128xf32>
    %12 = arith.subf %6, %11 : vector<8x128xf32>
    %13 = arith.mulf %12, %12 : vector<8x128xf32>
    %cst_9 = arith.constant dense<0.000000e+00> : vector<128xf32>
    %14 = vector.multi_reduction <add>, %13, %cst_9 [0] : vector<8x128xf32> to vector<128xf32>
    %15 = vector.shape_cast %14 : vector<128xf32> to vector<1x128xf32>
    %cst_10 = arith.constant 1.250000e-01 : f32
    %16 = vector.broadcast %cst_10 : f32 to vector<1x128xf32>
    %17 = arith.mulf %15, %16 : vector<1x128xf32>
    %c0_11 = arith.constant 0 : index
    %c0_12 = arith.constant 0 : index
    %18 = vector.load %arg3[%c0_11, %c0_12] : memref<2x128xf32, #tpu.memory_space<vmem>>, vector<1x128xf32>
    %c1 = arith.constant 1 : index
    %c0_13 = arith.constant 0 : index
    %19 = vector.load %arg3[%c1, %c0_13] : memref<2x128xf32, #tpu.memory_space<vmem>>, vector<1x128xf32>
    %cst_14 = arith.constant 9.99999974E-6 : f32
    %20 = vector.broadcast %cst_14 : f32 to vector<1x128xf32>
    %21 = arith.addf %17, %20 : vector<1x128xf32>
    %22 = math.rsqrt %21 : vector<1x128xf32>
    %23 = arith.mulf %18, %22 : vector<1x128xf32>
    %24 = arith.mulf %10, %23 : vector<1x128xf32>
    %25 = arith.subf %19, %24 : vector<1x128xf32>
    %26 = vector.broadcast %23 : vector<1x128xf32> to vector<8x128xf32>
    %27 = arith.mulf %6, %26 : vector<8x128xf32>
    %28 = vector.broadcast %25 : vector<1x128xf32> to vector<8x128xf32>
    %29 = arith.addf %27, %28 : vector<8x128xf32>
    %cst_15 = arith.constant 0.000000e+00 : f32
    %30 = vector.broadcast %cst_15 : f32 to vector<8x128xf32>
    %31 = arith.maximumf %29, %30 : vector<8x128xf32>
    %c0_16 = arith.constant 0 : index
    %c0_17 = arith.constant 0 : index
    %32 = vector.load %arg4[%c0_16, %c0_17] : memref<8x128xf32, #tpu.memory_space<vmem>>, vector<8x128xf32>
    tpu.vector_store %arg4[%c0_16, %c0_17], %31 {strides = array<i32>} : memref<8x128xf32, #tpu.memory_space<vmem>>, vector<8x128xf32>,
    return
  }
  func.func @transform_0(%arg0: i32) -> (i32, i32) {
    %c0_i32 = arith.constant 0 : i32
    %c0_i32_0 = arith.constant 0 : i32
    %c0_i32_1 = arith.constant 0 : i32
    return %c0_i32, %c0_i32_0 : i32, i32
  }
  func.func @transform_1(%arg0: i32) -> (i32, i32) {
    %c0_i32 = arith.constant 0 : i32
    %c0_i32_0 = arith.constant 0 : i32
    return %arg0, %c0_i32 : i32, i32
  }
  func.func @transform_2(%arg0: i32) -> (i32, i32) {
    %c0_i32 = arith.constant 0 : i32
    %c0_i32_0 = arith.constant 0 : i32
    return %c0_i32, %arg0 : i32, i32
  }
  func.func @transform_3(%arg0: i32) -> (i32, i32) {
    %c0_i32 = arith.constant 0 : i32
    %c0_i32_0 = arith.constant 0 : i32
    return %c0_i32, %arg0 : i32, i32
  }
}

</mosaic_0001>

<llo_original>
// kernel: linear_block_forward.1
$region0: #{linear_block_forward.1}
  #allocation0 [shape = 'u32[]', space=smem, size = 0x4, offset = 0x4, fixed_abs, tag = 'smem constant byte address 0x4 - core index']
  #allocation1 [shape = 'u32[144,128]{1,0:T(1,128)}', space=vmem, size = 0x12000, scoped, tag = 'internal scratch']
  %s0 = inlined_call_operand.vmem [shape: f32[8,32], index: 0, kind: input, shape index: {}]
  %s1 = inlined_call_operand.vmem [shape: f32[128,32], index: 1, kind: input, shape index: {}]
  %s2 = inlined_call_operand.vmem [shape: f32[2,128], index: 2, kind: input, shape index: {}]
  %s3 = inlined_call_operand.hbm [shape: f32[8,128], index: 3, kind: output, shape index: {}]
  %s4 = sld [smem:[#allocation0]]
  $region22: #{linear_block_forward.1} parent=0
    _
  %s6 = ssub.s32 1, %s4
  %s7 = scalar_select 0, %s6, %s4
  $region1: #{linear_block_forward.1} parent=0
    #allocation2 [shape = 'u8[4096]{0}', space=vmem, size = 0x1000, scoped, tag = 'output window, operand 0, single buffered']
    #allocation3 [shape = 's32[1]{0}', space=sflag, size = 0x4, scoped, tag = 'scoped memory for linear_block_forward.1']
    %8 = vsyncpa [#allocation3], 0
    // Predicated region
    $region2: #{linear_block_forward.1} parent=1 // pred_check
      _
    $region3: #{linear_block_forward.1} parent=1 // pred_check_branch
      %10 = sbr.rel (0) target = $region5
    $region4: #{linear_block_forward.1} parent=1 // pred_region
      _
    $region5: #{linear_block_forward.1} parent=1 // pred_fallthru
      _
    // Predicated region
    $region6: #{linear_block_forward.1} parent=1 // pred_check
      _
    $region7: #{linear_block_forward.1} parent=1 // pred_check_branch
      %12 = sbr.rel (0) target = $region9
    $region8: #{linear_block_forward.1} parent=1 // pred_region
      _
    $region9: #{linear_block_forward.1} parent=1 // pred_fallthru
      _
    // Predicated region
    $region10: #{linear_block_forward.1} parent=1 // pred_check
      _
    $region11: #{linear_block_forward.1} parent=1 // pred_check_branch
      %14 = sbr.rel (0) target = $region13
    $region12: #{linear_block_forward.1} parent=1 // pred_region
      _
    $region13: #{linear_block_forward.1} parent=1 // pred_fallthru
      _
    %v16 = vld [vmem:[%s0] sm:$0xff]
    %v17 = vpack.c.bf16 %v16, %v16
    %v18 = vld [vmem:[%s1] sm:$0xff]
    %v19 = vld [vmem:[%s1 + $0x8] sm:$0xff]
    %v20 = vld [vmem:[%s1 + $0x10] sm:$0xff]
    %v21 = vld [vmem:[%s1 + $0x18] sm:$0xff]
    %v22 = vld [vmem:[%s1 + $0x20] sm:$0xff]
    %v23 = vld [vmem:[%s1 + $0x28] sm:$0xff]
    %v24 = vld [vmem:[%s1 + $0x30] sm:$0xff]
    %v25 = vld [vmem:[%s1 + $0x38] sm:$0xff]
    %v26 = vld [vmem:[%s1 + $0x40] sm:$0xff]
    %v27 = vld [vmem:[%s1 + $0x48] sm:$0xff]
    %v28 = vld [vmem:[%s1 + $0x50] sm:$0xff]
    %v29 = vld [vmem:[%s1 + $0x58] sm:$0xff]
    %v30 = vld [vmem:[%s1 + $0x60] sm:$0xff]
    %v31 = vld [vmem:[%s1 + $0x68] sm:$0xff]
    %v32 = vld [vmem:[%s1 + $0x70] sm:$0xff]
    %v33 = vld [vmem:[%s1 + $0x78] sm:$0xff]
    %v34 = vpack.c.bf16 %v19, %v18
    %v35 = vpack.c.bf16 %v21, %v20
    %v36 = vpack.c.bf16 %v23, %v22
    %v37 = vpack.c.bf16 %v25, %v24
    %v38 = vpack.c.bf16 %v27, %v26
    %v39 = vpack.c.bf16 %v29, %v28
    %v40 = vpack.c.bf16 %v31, %v30
    %v41 = vpack.c.bf16 %v33, %v32
    %vm42 = vcmask 261120
    %v44 = vsel %vm42, %v17, 0
    %v47 = vsel %vm42, %v34, 0
    %v50 = vsel %vm42, %v35, 0
    %v53 = vsel %vm42, %v36, 0
    %v56 = vsel %vm42, %v37, 0
    %v59 = vsel %vm42, %v38, 0
    %v62 = vsel %vm42, %v39, 0
    %v65 = vsel %vm42, %v40, 0
    %v68 = vsel %vm42, %v41, 0
    %70 = vmatprep.subr.bf16.mxu0 0
    %71 = vmatpush1.bf16.xpose.msra.mxu0 %v47
    %72 = vmatprep.subr.bf16.mxu0 0
    %73 = vmatpush1.bf16.xpose.msra.mxu0 %v50
    %74 = vmatprep.subr.bf16.mxu0 0
    %75 = vmatpush1.bf16.xpose.msra.mxu0 %v53
    %76 = vmatprep.subr.bf16.mxu0 0
    %77 = vmatpush1.bf16.xpose.msra.mxu0 %v56
    %78 = vmatprep.subr.bf16.mxu0 0
    %79 = vmatpush1.bf16.xpose.msra.mxu0 %v59
    %80 = vmatprep.subr.bf16.mxu0 0
    %81 = vmatpush1.bf16.xpose.msra.mxu0 %v62
    %82 = vmatprep.subr.bf16.mxu0 0
    %83 = vmatpush1.bf16.xpose.msra.mxu0 %v65
    %84 = vmatprep.subr.bf16.mxu0 0
    %85 = vmatpush1.bf16.xpose.msra.mxu0 %v68
    %86 = vmatprep.subr.bf16.mxu0 0
    %87 = vmatpush1.bf16.xpose.msra.mxu0 0
    %88 = vmatprep.subr.bf16.mxu0 0
    %89 = vmatpush1.bf16.xpose.msra.mxu0 0
    %90 = vmatprep.subr.bf16.mxu0 0
    %91 = vmatpush1.bf16.xpose.msra.mxu0 0
    %92 = vmatprep.subr.bf16.mxu0 0
    %93 = vmatpush1.bf16.xpose.msra.mxu0 0
    %94 = vmatprep.subr.bf16.mxu0 0
    %95 = vmatpush1.bf16.xpose.msra.mxu0 0
    %96 = vmatprep.subr.bf16.mxu0 0
    %97 = vmatpush1.bf16.xpose.msra.mxu0 0
    %98 = vmatprep.subr.bf16.mxu0 0
    %99 = vmatpush1.bf16.xpose.msra.mxu0 0
    %100 = vmatprep.subr.bf16.mxu0 0
    %101 = vmatpush1.bf16.xpose.msra.mxu0 0
    %102 = vmatprep.mubr.bf16.mxu0 0
    %103 = vmatmul.mubr.bf16.gmra.mrb[0].mxu0 %v44
    %v104 = vpop.f32.mrb[0].mxu0
    %v105 = vadd.f32 0.0, %v104
    %v106 = vpop.f32.mrb[0].mxu0
    %v107 = vpop.f32.mrb[0].mxu0
    %v108 = vpop.f32.mrb[0].mxu0
    %109 = vdwg.mxu0
    %110 = vst [vmem:[#allocation2] sm:$0xff] %v105
    %v111 = vld [vmem:[#allocation2] sm:$0xff]
    %v112 = vrot.slane %v111, 4
    %v113 = vadd.f32 %v111, %v112
    %v114 = vrot.slane %v113, 2
    %v115 = vadd.f32 %v113, %v114
    %v116 = vrot.slane %v115, 1
    %v117 = vadd.f32 %v115, %v116
    %v118 = vmul.f32 %v117, 0.125
    %v119 = vsub.f32 %v111, %v118
    %v120 = vmul.f32 %v119, %v119
    %v121 = vrot.slane %v120, 4
    %v122 = vadd.f32 %v120, %v121
    %v123 = vrot.slane %v122, 2
    %v124 = vadd.f32 %v122, %v123
    %v125 = vrot.slane %v124, 1
    %v126 = vadd.f32 %v124, %v125
    %v127 = vmul.f32 %v126, 0.125
    %v128 = vld [vmem:[%s2] sm:$0x1]
    %v129 = vld [vmem:[%s2 + $0x1] sm:$0x1]
    %v130 = vadd.f32 %v127, 1e-05
    %v131 = vrsqrt.pop %v130
    %v132 = vmul.f32 %v128, %v131
    %v133 = vmul.f32 %v118, %v132
    %v134 = vsub.f32 %v129, %v133
    %v135 = vlaneseq
    %v136 = vshrl.u32 %v135, 7
    %v137 = vsub.s32 0, %v136
    %v138 = vrot.slane %v132, %v137
    %v139 = vmul.f32 %v111, %v138
    %v140 = vlaneseq
    %v141 = vshrl.u32 %v140, 7
    %v142 = vsub.s32 0, %v141
    %v143 = vrot.slane %v134, %v142
    %v144 = vadd.f32 %v139, %v143
    %v145 = vmax.f32 %v144, 0.0
    %146 = vst [vmem:[#allocation2] sm:$0xff] %v145
    // Predicated region
    $region14: #{linear_block_forward.1} parent=1 // pred_check
      _
    $region15: #{linear_block_forward.1} parent=1 // pred_check_branch
      %148 = sbr.rel (0) target = $region17
    $region16: #{linear_block_forward.1} parent=1 // pred_region
      %s150 = ssub.s32 128, 128
      %151 = vsyncadd [#allocation3], %s150
      %s153 = sshll.u32 [#allocation2], 4
      %s154 = int_to_ptr.vmem [resolvable:$true] %s153
      %156 = dma.vmem_to_hbm [thread:$0]  %s154, 128, %s3, [#allocation3]
    $region17: #{linear_block_forward.1} parent=1 // pred_fallthru
      _
    // Predicated region
    $region18: #{linear_block_forward.1} parent=1 // pred_check
      _
    $region19: #{linear_block_forward.1} parent=1 // pred_check_branch
      %158 = sbr.rel (0) target = $region21
    $region20: #{linear_block_forward.1} parent=1 // pred_region
      %159 = dma.done [#allocation3], 128
    $region21: #{linear_block_forward.1} parent=1 // pred_fallthru
      _
    %160 = vsyncpa [#allocation3], 1

</llo_original>
